<compile_context>
chip_gen: v5e
topology: v5e:2x2
jax: 0.10.0
libtpu: 0.0.40
codegen_flags: <defaults>
</compile_context>

<pallas_src>
import jax
import jax.numpy as jnp
import numpy as np
from jax.experimental import pallas as pl
from jax.experimental.pallas import tpu as pltpu


# ------------------------------ Pallas kernel ---------------------------------

def encoder_blstm_kernel(tok_ref, emb_ref, w_ref, state0_ref, out_ref, state_ref):
    """One bidirectional LSTM step per grid iteration; state carried in VMEM.

    tok_ref    : (T,)       int32, SMEM (scalar prefetch)  token ids
    emb_ref    : (V, H)     VMEM, resident                 embedding table
    w_ref      : (3H+8, 8H) VMEM, resident                 packed W_ih/W_hh + bias row
    state0_ref : (2, 2H)    VMEM, resident                 [h_f|h_b ; c_f|c_b]
    out_ref    : (T, 2H)    VMEM, resident output          per-step [h_f|h_b]
    state_ref  : (2, 2H)    VMEM, resident output          carried / final state
    """
    H = emb_ref.shape[1]
    H2 = 2 * H
    t = pl.program_id(0)

    @pl.when(t == 0)
    def _init():                                   # load the caller-provided hidden once
        state_ref[...] = state0_ref[...]

    tok = tok_ref[t]
    x = emb_ref[pl.ds(tok, 1), :]                  # (1, H) embedding row gather
    h = state_ref[0:1, :]                          # (1, 2H) = [h_f | h_b]
    c = state_ref[1:2, :]                          # (1, 2H) = [c_f | c_b]

    # All 8 gate blocks of both directions via two accumulating MXU dots + bias row.
    # Column layout (gate-major, direction-minor): [ i | f | g | o ], each 2H wide.
    gates = (jnp.dot(x, w_ref[0:H, :], preferred_element_type=jnp.float32)
             + jnp.dot(h, w_ref[H:3 * H, :], preferred_element_type=jnp.float32)
             + w_ref[3 * H:3 * H + 1, :])          # (1, 8H)

    i = jax.nn.sigmoid(gates[:, 0 * H2:1 * H2])    # all slices are 2H-lane aligned
    f = jax.nn.sigmoid(gates[:, 1 * H2:2 * H2])
    g = jnp.tanh(gates[:, 2 * H2:3 * H2])
    o = jax.nn.sigmoid(gates[:, 3 * H2:4 * H2])

    c_new = f * c + i * g                          # (1, 2H) — both directions at once
    h_new = o * jnp.tanh(c_new)                    # (1, 2H)

    out_ref[pl.ds(t, 1), :] = h_new                # lane-dense 128-wide row store
    state_ref[0:1, :] = h_new
    state_ref[1:2, :] = c_new


# ------------------------------ parameter setup --------------------------------

def init_params(key, input_size, hidden_size):
    """Parameters in PyTorch layout: weight_ih/hh (4H, H), bias (4H,)."""
    H = hidden_size
    ks = jax.random.split(key, 9)

    def rnd(k, shape, scale=0.1):
        return scale * jax.random.normal(k, shape, dtype=jnp.float32)

    return {
        "emb": rnd(ks[0], (input_size, H)),
        "wih_f": rnd(ks[1], (4 * H, H)), "whh_f": rnd(ks[2], (4 * H, H)),
        "bih_f": rnd(ks[3], (4 * H,)),   "bhh_f": rnd(ks[4], (4 * H,)),
        "wih_b": rnd(ks[5], (4 * H, H)), "whh_b": rnd(ks[6], (4 * H, H)),
        "bih_b": rnd(ks[7], (4 * H,)),   "bhh_b": rnd(ks[8], (4 * H,)),
    }


def pack_params(params):
    """Fold all LSTM weights + biases into one (3H+8, 8H) block matrix (done ONCE,
    outside the jitted forward).

      rows [0 : H)   : W_ih  (both directions)
      rows [H : 2H)  : W_hh  forward
      rows [2H: 3H)  : W_hh  backward
      row   3H       : b_ih + b_hh (both directions); remaining pad rows are zero
      columns        : gate-major, direction-minor
                       [ i_f i_b | f_f f_b | g_f g_b | o_f o_b ], each block H wide
    """
    H = params["whh_f"].shape[1]
    assert H % 8 == 0
    W = np.zeros((3 * H + 8, 8 * H), np.float32)
    for k in range(4):                               # PyTorch gate order: i, f, g, o
        for d, sfx in enumerate(("f", "b")):
            cs = (2 * k + d) * H
            W[0:H, cs:cs + H] = np.asarray(params[f"wih_{sfx}"][k * H:(k + 1) * H, :]).T
            r0 = H if d == 0 else 2 * H
            W[r0:r0 + H, cs:cs + H] = np.asarray(params[f"whh_{sfx}"][k * H:(k + 1) * H, :]).T
            W[3 * H, cs:cs + H] = np.asarray(params[f"bih_{sfx}"][k * H:(k + 1) * H]
                                             + params[f"bhh_{sfx}"][k * H:(k + 1) * H])
    return {"emb": params["emb"], "w": jnp.asarray(W)}


# --------------------------------- wrapper --------------------------------------

@jax.jit
def encoder_forward(tokens, h0, c0, packed):
    """The original per-token forward() loop, fused into one gridded pallas_call.

    tokens : (T,) int32 token ids  (T = 1 == a single EncoderBLSTM_WE.forward)
    h0, c0 : (2, 1, H)  as in PyTorch (direction-major)
    returns: output (T, 1, 2H) with every per-step output, and (hn, cn) each
             (2, 1, H) — the hidden state after the last step.
    """
    emb, W = packed["emb"], packed["w"]
    V, H = emb.shape
    H2 = 2 * H
    T = tokens.shape[0]

    # clamp ids: out-of-bounds VMEM reads on TPU are silent garbage
    toks = jnp.clip(tokens.reshape(T).astype(jnp.int32), 0, V - 1)

    # pack hidden state: row 0 = [h_f | h_b], row 1 = [c_f | c_b]  -> (2, 2H)
    state0 = jnp.concatenate([h0.reshape(1, H2), c0.reshape(1, H2)], axis=0)

    grid_spec = pltpu.PrefetchScalarGridSpec(
        num_scalar_prefetch=1,                                    # token ids -> SMEM
        grid=(T,),
        in_specs=[
            pl.BlockSpec((V, H), lambda t, tk: (0, 0)),           # emb table: DMA'd once, resident
            pl.BlockSpec(W.shape, lambda t, tk: (0, 0)),          # packed weights+bias: resident
            pl.BlockSpec((2, H2), lambda t, tk: (0, 0)),          # initial state: resident
        ],
        out_specs=(
            pl.BlockSpec((T, H2), lambda t, tk: (0, 0)),          # lane-dense (T, 2H) output slab
            pl.BlockSpec((2, H2), lambda t, tk: (0, 0)),          # carried (h, c) state
        ),
    )

    out_slab, state = pl.pallas_call(
        encoder_blstm_kernel,
        out_shape=(jax.ShapeDtypeStruct((T, H2), jnp.float32),
                   jax.ShapeDtypeStruct((2, H2), jnp.float32)),
        grid_spec=grid_spec,
        compiler_params=pltpu.CompilerParams(
            dimension_semantics=("arbitrary",)),                  # sequential recurrence over time
    )(toks, emb, W, state0)

    output = out_slab.reshape(T, 1, H2)                           # PyTorch (seq, batch, 2H)
    hn = state[0].reshape(2, 1, H)                                # [h_fwd ; h_bwd]
    cn = state[1].reshape(2, 1, H)
    return output, (hn, cn)


# ---------------------------- pure-JAX reference --------------------------------

def reference_forward(tokens, h0, c0, params):
    """PyTorch semantics: forward() called once per token, (h, c) carried."""
    H = params["whh_f"].shape[1]
    h = [h0[0], h0[1]]
    c = [c0[0], c0[1]]
    outs = []

    def cell(x, h, c, wih, whh, bih, bhh):
        g = x @ wih.T + bih + h @ whh.T + bhh
        i = jax.nn.sigmoid(g[:, 0:H]); f = jax.nn.sigmoid(g[:, H:2 * H])
        ch = jnp.tanh(g[:, 2 * H:3 * H]); o = jax.nn.sigmoid(g[:, 3 * H:4 * H])
        c_new = f * c + i * ch
        return o * jnp.tanh(c_new), c_new

    for tok in np.asarray(tokens).reshape(-1):
        x = params["emb"][int(tok)].reshape(1, H)
        h[0], c[0] = cell(x, h[0], c[0], params["wih_f"], params["whh_f"],
                          params["bih_f"], params["bhh_f"])
        h[1], c[1] = cell(x, h[1], c[1], params["wih_b"], params["whh_b"],
                          params["bih_b"], params["bhh_b"])
        outs.append(jnp.concatenate([h[0], h[1]], axis=1))        # (1, 2H)

    output = jnp.stack(outs, axis=0)                              # (T, 1, 2H)
    hn = jnp.concatenate([h[0], h[1]], axis=0).reshape(2, 1, H)
    cn = jnp.concatenate([c[0], c[1]], axis=0).reshape(2, 1, H)
    return output, (hn, cn)


if __name__ == "__main__":
    V, H, T = 16, 64, 8            # input_size (vocab), hidden_size, fused sequence length
    key = jax.random.PRNGKey(0)
    pkey, tkey, hkey, ckey = jax.random.split(key, 4)

    params = init_params(pkey, V, H)
    packed = pack_params(params)                                  # packed once, outside jit

    tokens = jax.random.randint(tkey, (T,), 0, V, dtype=jnp.int32)
    # initHidden() is zeros; use small random state to exercise the W_hh path
    h0 = 0.1 * jax.random.normal(hkey, (2, 1, H), dtype=jnp.float32)
    c0 = 0.1 * jax.random.normal(ckey, (2, 1, H), dtype=jnp.float32)

    output, (hn, cn) = encoder_forward(tokens, h0, c0, packed)
    jax.block_until_ready((output, hn, cn))

    assert output.shape == (T, 1, 2 * H)
    assert hn.shape == (2, 1, H) and cn.shape == (2, 1, H)

    out_r, (hn_r, cn_r) = reference_forward(tokens, h0, c0, params)
    assert np.allclose(np.asarray(output), np.asarray(out_r), rtol=1e-2, atol=1e-3)
    assert np.allclose(np.asarray(hn), np.asarray(hn_r), rtol=1e-2, atol=1e-3)
    assert np.allclose(np.asarray(cn), np.asarray(cn_r), rtol=1e-2, atol=1e-3)

    # T = 1 is exactly one EncoderBLSTM_WE.forward call
    out1, (hn1, cn1) = encoder_forward(tokens[:1], h0, c0, packed)
    jax.block_until_ready((out1, hn1, cn1))
    assert out1.shape == (1, 1, 2 * H)
    assert np.allclose(np.asarray(out1), np.asarray(out_r[:1]), rtol=1e-2, atol=1e-3)

    print("KERNEL_OK")
</pallas_src>

<mosaic_0001>
module attributes {stable_mosaic.version = 11 : i64} {
  func.func @encoder_blstm_kernel(%arg0: i32, %arg1: memref<8xi32, #tpu.memory_space<smem>>, %arg2: memref<16x64xf32, #tpu.memory_space<vmem>>, %arg3: memref<200x512xf32, #tpu.memory_space<vmem>>, %arg4: memref<2x128xf32, #tpu.memory_space<vmem>>, %arg5: memref<8x128xf32, #tpu.memory_space<vmem>>, %arg6: memref<2x128xf32, #tpu.memory_space<vmem>>) attributes {dimension_semantics = [#tpu.dimension_semantics<arbitrary>], iteration_bounds = array<i64: 8>, scalar_prefetch = 1 : i64, scratch_operands = 0 : i64, tpu.core_type = #tpu.core_type<tc>, window_params = [{pipeline_mode = #tpu.pipeline_mode<synchronous>, transform_indices = @transform_0, window_bounds = array<i64: 16, 64>}, {pipeline_mode = #tpu.pipeline_mode<synchronous>, transform_indices = @transform_1, window_bounds = array<i64: 200, 512>}, {pipeline_mode = #tpu.pipeline_mode<synchronous>, transform_indices = @transform_2, window_bounds = array<i64: 2, 128>}, {pipeline_mode = #tpu.pipeline_mode<synchronous>, transform_indices = @transform_3, window_bounds = array<i64: 8, 128>}, {pipeline_mode = #tpu.pipeline_mode<synchronous>, transform_indices = @transform_4, window_bounds = array<i64: 2, 128>}]} {
    %c0_i32 = arith.constant 0 : i32
    %0 = arith.cmpi eq, %arg0, %c0_i32 : i32
    %1 = arith.extui %0 : i1 to i32
    %c0_i32_0 = arith.constant 0 : i32
    %2 = arith.cmpi ne, %1, %c0_i32_0 : i32
    scf.if %2 {
      %c0_17 = arith.constant 0 : index
      %c0_18 = arith.constant 0 : index
      %45 = vector.load %arg4[%c0_17, %c0_18] : memref<2x128xf32, #tpu.memory_space<vmem>>, vector<2x128xf32>
      %c0_19 = arith.constant 0 : index
      %c0_20 = arith.constant 0 : index
      %46 = vector.load %arg6[%c0_19, %c0_20] : memref<2x128xf32, #tpu.memory_space<vmem>>, vector<2x128xf32>
      tpu.vector_store %arg6[%c0_19, %c0_20], %45 {strides = array<i32>} : memref<2x128xf32, #tpu.memory_space<vmem>>, vector<2x128xf32>,
    } else {
    }
    %3 = arith.index_cast %arg0 : i32 to index
    %4 = memref.load %arg1[%3] : memref<8xi32, #tpu.memory_space<smem>>
    %5 = arith.index_cast %4 : i32 to index
    %c0 = arith.constant 0 : index
    %6 = vector.load %arg2[%5, %c0] : memref<16x64xf32, #tpu.memory_space<vmem>>, vector<1x64xf32>
    %c0_1 = arith.constant 0 : index
    %c0_2 = arith.constant 0 : index
    %7 = vector.load %arg6[%c0_1, %c0_2] : memref<2x128xf32, #tpu.memory_space<vmem>>, vector<1x128xf32>
    %c1 = arith.constant 1 : index
    %c0_3 = arith.constant 0 : index
    %8 = vector.load %arg6[%c1, %c0_3] : memref<2x128xf32, #tpu.memory_space<vmem>>, vector<1x128xf32>
    %c0_4 = arith.constant 0 : index
    %c0_5 = arith.constant 0 : index
    %9 = vector.load %arg3[%c0_4, %c0_5] : memref<200x512xf32, #tpu.memory_space<vmem>>, vector<64x512xf32>
    %cst = arith.constant dense<0.000000e+00> : vector<1x512xf32>
    %10 = tpu.matmul %6, %9, %cst {dimension_numbers = #tpu.dot_dimension_numbers<[1], [0], [0], [1], [0, 0, 1, 1], [], []>} : vector<1x64xf32>, vector<64x512xf32>, vector<1x512xf32> -> vector<1x512xf32>
    %c64 = arith.constant 64 : index
    %c0_6 = arith.constant 0 : index
    %11 = vector.load %arg3[%c64, %c0_6] : memref<200x512xf32, #tpu.memory_space<vmem>>, vector<128x512xf32>
    %cst_7 = arith.constant dense<0.000000e+00> : vector<1x512xf32>
    %12 = tpu.matmul %7, %11, %cst_7 {dimension_numbers = #tpu.dot_dimension_numbers<[1], [0], [0], [1], [0, 0, 1, 1], [], []>} : vector<1x128xf32>, vector<128x512xf32>, vector<1x512xf32> -> vector<1x512xf32>
    %13 = arith.addf %10, %12 : vector<1x512xf32>
    %c192 = arith.constant 192 : index
    %c0_8 = arith.constant 0 : index
    %14 = vector.load %arg3[%c192, %c0_8] : memref<200x512xf32, #tpu.memory_space<vmem>>, vector<1x512xf32>
    %15 = arith.addf %13, %14 : vector<1x512xf32>
    %16 = vector.extract_strided_slice %15 {offsets = [0, 0], sizes = [1, 128], strides = [1, 1]} : vector<1x512xf32> to vector<1x128xf32>
    %17 = arith.negf %16 : vector<1x128xf32>
    %18 = math.exp %17 : vector<1x128xf32>
    %cst_9 = arith.constant 1.000000e+00 : f32
    %19 = vector.broadcast %cst_9 : f32 to vector<1x128xf32>
    %20 = arith.addf %19, %18 : vector<1x128xf32>
    %21 = arith.divf %19, %20 : vector<1x128xf32>
    %22 = vector.extract_strided_slice %15 {offsets = [0, 128], sizes = [1, 128], strides = [1, 1]} : vector<1x512xf32> to vector<1x128xf32>
    %23 = arith.negf %22 : vector<1x128xf32>
    %24 = math.exp %23 : vector<1x128xf32>
    %cst_10 = arith.constant 1.000000e+00 : f32
    %25 = vector.broadcast %cst_10 : f32 to vector<1x128xf32>
    %26 = arith.addf %25, %24 : vector<1x128xf32>
    %27 = arith.divf %25, %26 : vector<1x128xf32>
    %28 = vector.extract_strided_slice %15 {offsets = [0, 256], sizes = [1, 128], strides = [1, 1]} : vector<1x512xf32> to vector<1x128xf32>
    %29 = math.tanh %28 : vector<1x128xf32>
    %30 = vector.extract_strided_slice %15 {offsets = [0, 384], sizes = [1, 128], strides = [1, 1]} : vector<1x512xf32> to vector<1x128xf32>
    %31 = arith.negf %30 : vector<1x128xf32>
    %32 = math.exp %31 : vector<1x128xf32>
    %cst_11 = arith.constant 1.000000e+00 : f32
    %33 = vector.broadcast %cst_11 : f32 to vector<1x128xf32>
    %34 = arith.addf %33, %32 : vector<1x128xf32>
    %35 = arith.divf %33, %34 : vector<1x128xf32>
    %36 = arith.mulf %27, %8 : vector<1x128xf32>
    %37 = arith.mulf %21, %29 : vector<1x128xf32>
    %38 = arith.addf %36, %37 : vector<1x128xf32>
    %39 = math.tanh %38 : vector<1x128xf32>
    %40 = arith.mulf %35, %39 : vector<1x128xf32>
    %41 = arith.index_cast %arg0 : i32 to index
    %c0_12 = arith.constant 0 : index
    %42 = vector.load %arg5[%41, %c0_12] : memref<8x128xf32, #tpu.memory_space<vmem>>, vector<1x128xf32>
    tpu.vector_store %arg5[%41, %c0_12], %40 {strides = array<i32>} : memref<8x128xf32, #tpu.memory_space<vmem>>, vector<1x128xf32>,
    %c0_13 = arith.constant 0 : index
    %c0_14 = arith.constant 0 : index
    %43 = vector.load %arg6[%c0_13, %c0_14] : memref<2x128xf32, #tpu.memory_space<vmem>>, vector<1x128xf32>
    tpu.vector_store %arg6[%c0_13, %c0_14], %40 {strides = array<i32>} : memref<2x128xf32, #tpu.memory_space<vmem>>, vector<1x128xf32>,
    %c1_15 = arith.constant 1 : index
    %c0_16 = arith.constant 0 : index
    %44 = vector.load %arg6[%c1_15, %c0_16] : memref<2x128xf32, #tpu.memory_space<vmem>>, vector<1x128xf32>
    tpu.vector_store %arg6[%c1_15, %c0_16], %38 {strides = array<i32>} : memref<2x128xf32, #tpu.memory_space<vmem>>, vector<1x128xf32>,
    return
  }
  func.func @transform_0(%arg0: i32, %arg1: memref<8xi32, #tpu.memory_space<smem>>) -> (i32, i32) {
    %c0_i32 = arith.constant 0 : i32
    %c0_i32_0 = arith.constant 0 : i32
    %c0_i32_1 = arith.constant 0 : i32
    return %c0_i32, %c0_i32_0 : i32, i32
  }
  func.func @transform_1(%arg0: i32, %arg1: memref<8xi32, #tpu.memory_space<smem>>) -> (i32, i32) {
    %c0_i32 = arith.constant 0 : i32
    %c0_i32_0 = arith.constant 0 : i32
    %c0_i32_1 = arith.constant 0 : i32
    return %c0_i32, %c0_i32_0 : i32, i32
  }
  func.func @transform_2(%arg0: i32, %arg1: memref<8xi32, #tpu.memory_space<smem>>) -> (i32, i32) {
    %c0_i32 = arith.constant 0 : i32
    %c0_i32_0 = arith.constant 0 : i32
    %c0_i32_1 = arith.constant 0 : i32
    return %c0_i32, %c0_i32_0 : i32, i32
  }
  func.func @transform_3(%arg0: i32, %arg1: memref<8xi32, #tpu.memory_space<smem>>) -> (i32, i32) {
    %c0_i32 = arith.constant 0 : i32
    %c0_i32_0 = arith.constant 0 : i32
    %c0_i32_1 = arith.constant 0 : i32
    return %c0_i32, %c0_i32_0 : i32, i32
  }
  func.func @transform_4(%arg0: i32, %arg1: memref<8xi32, #tpu.memory_space<smem>>) -> (i32, i32) {
    %c0_i32 = arith.constant 0 : i32
    %c0_i32_0 = arith.constant 0 : i32
    %c0_i32_1 = arith.constant 0 : i32
    return %c0_i32, %c0_i32_0 : i32, i32
  }
}

</mosaic_0001>

<llo_original>
// kernel: squeeze.3
$region0: #{squeeze.3}
  %s0 = inlined_call_operand.vmem [shape: f32[128], index: 0, kind: input, shape index: {}]
  %s1 = inlined_call_operand.hbm [shape: f32[2,1,64], index: 1, kind: output, shape index: {}]
  $region1: #{squeeze.3} parent=0
    #allocation0 [shape = 'u8[1024]{0}', space=vmem, size = 0x400, scoped, tag = 'operand span for operand 1']
    #allocation1 [shape = 's32[1]{0}', space=sflag, size = 0x4, scoped, tag = 'scoped memory for squeeze.3']
    #allocation2 [shape = 'u8[4096]{0}', space=vmem, size = 0x1000, scoped, tag = 'scoped mem for output reshape']
    #allocation3 [shape = 'u8[4096]{0}', space=vmem, size = 0x1000, scoped, tag = 'scoped mem for input reshape']
    %2 = vsyncpa [#allocation1], 0
    %s4 = ssub.s32 2, 1
    %v5 = vld [vmem:[%s0] sm:%s4]
    %6 = vst [vmem:[#allocation3] sm:%s4] %v5
    %v7 = vld [vmem:[#allocation3] sm:$0x1]
    %vm8 = vcmask 523264
    %9 = vst.msk [vmem:[#allocation2] sm:$0x1] %vm8, %v7
    %v10 = vld [vmem:[#allocation3] sm:$0x1]
    %11 = vrot.lane.b32.xlu0 %v10, 64
    %v12 = vpop.permute.xlu0 %11
    %vm13 = vcmask 523264
    %s14 = scalar_lea.vmem [#allocation2], 1
    %15 = vst.msk [vmem:[%s14] sm:$0x1] %vm13, %v12
    %s17 = ssub.s32 4, 1
    %v18 = vld [vmem:[#allocation2] sm:%s17]
    %s20 = ssub.s32 4, 1
    %21 = vst [vmem:[#allocation0] sm:%s20] %v18
    %23 = vsyncadd [#allocation1], 0
    %s25 = sshll.u32 [#allocation0], 4
    %s26 = int_to_ptr.vmem [resolvable:$true] %s25
    %s27 = sshll.u32 %s1, 4
    %s28 = int_to_ptr.hbm [resolvable:$true] %s27
    %30 = dma.vmem_to_hbm [thread:$0]  %s26, 32, %s28, [#allocation1]
    %32 = dma.done [#allocation1], 32
    %33 = vsyncpa [#allocation1], 1

// kernel: encoder_forward.1
$region0: #{encoder_forward.1}
  #allocation0 [shape = 'u32[]', space=smem, size = 0x4, offset = 0x4, fixed_abs, tag = 'smem constant byte address 0x4 - core index']
  #allocation1 [shape = 'u32[72,128]{1,0:T(1,128)}', space=vmem, size = 0x9000, scoped, tag = 'internal scratch']
  #allocation2 [shape = 's32[1]{0}', space=sflag, size = 0x4, scoped, tag = 'scoped memory for encoder_forward.1']
  #allocation3 [shape = 'u8[512]{0}', space=smem, size = 0x200, scoped, tag = 'prefetched SMEM operand 0']
  %s0 = inlined_call_operand.vmem [shape: s32[8], index: 0, kind: input, shape index: {}]
  %s1 = inlined_call_operand.hbm [shape: f32[16,64], index: 1, kind: input, shape index: {}]
  %s2 = inlined_call_operand.hbm [shape: f32[200,512], index: 2, kind: input, shape index: {}]
  %s3 = inlined_call_operand.vmem [shape: f32[2,128], index: 3, kind: input, shape index: {}]
  %s4 = inlined_call_operand.hbm [shape: f32[8,128], index: 4, kind: output, shape index: {0}]
  %s5 = inlined_call_operand.vmem [shape: f32[2,128], index: 5, kind: output, shape index: {1}]
  %6 = xla_tuple %s4, %s5
  %s7 = sld [smem:[#allocation0]]
  $region65: #{encoder_forward.1} parent=0
    _
  %s9 = ssub.s32 1, %s7
  %s10 = scalar_select 0, %s9, %s7
  %s12 = sshll.u32 %s0, 4
  %s13 = int_to_ptr.vmem [resolvable:$true] %s12
  %15 = dma.vmem_to_smem %s13, 16, [#allocation3], [#allocation2]
  %17 = dma.done [#allocation2], 16
  %18 = sfence
  $region1: #{encoder_forward.1} parent=0
    #allocation4 [shape = 'u8[8192]{0}', space=vmem, size = 0x2000, scoped, tag = 'input window, operand 1, single buffered']
    #allocation5 [shape = 's32[2]{0}', space=sflag, size = 0x8, scoped, tag = 'scoped memory for encoder_forward.1']
    #allocation6 [shape = 's32[2]{0}', space=sflag, size = 0x8, scoped, tag = 'scoped memory for encoder_forward.1']
    #allocation7 [shape = 'u8[409600]{0}', space=vmem, size = 0x64000, scoped, tag = 'input window, operand 2, single buffered']
    #allocation8 [shape = 's32[1]{0}', space=sflag, size = 0x4, scoped, tag = 'scoped memory for encoder_forward.1']
    #allocation9 [shape = 'u8[4096]{0}', space=vmem, size = 0x1000, scoped, tag = 'output window, operand 0, single buffered']
    %19 = vsyncpa [#allocation5], 0
    %20 = vsyncpa [#allocation8], 0
    %21 = vsyncpa [#allocation6], 0
    loop: start=0, step=1, limit=10
    $region2: #{encoder_forward.1} parent=1 // loop_pre_header
      _
    $region3: #{encoder_forward.1} parent=1 // loop_header
      %s23 = sphi 0, %s27
      %p24 = scmp.ge.s32.totalorder %s23, 10
      %s31 = sphi 0, %s31
      %s33 = sphi 0, %s31
      %s34 = sphi 0, %s33
      %s48 = sphi 0, %s34
      %s52 = sphi 0, %s52
      %s54 = sphi 0, %s52
      %s55 = sphi 0, %s54
      %s69 = sphi 0, %s55
      %s73 = sphi 0, %s73
      %s75 = sphi 0, %s73
      %s76 = sphi 0, %s75
      %s90 = sphi 0, %s76
      %s94 = sphi 0, %s94
      %s96 = sphi 0, %s94
      %s97 = sphi 0, %s96
      %s111 = sphi 0, %s97
      %s115 = sphi 0, %s115
      %s117 = sphi 0, %s115
      %s118 = sphi 0, %s117
      %s132 = sphi 0, %s118
    $region4: #{encoder_forward.1} parent=1 // loop_header_branch
      %26 = sbr.rel (%p24) target = $region8
    $region5: #{encoder_forward.1} parent=1 // loop_body
      %s28 = ssub.s32 %s23, 1
      %s29 = ssub.s32 %s23, 2
      %s30 = sadd.s32 %s23, 1
      %s32 = sadd.s32 %s31, 1
      %p35 = scmp.eq.s32.totalorder %s23, 7
      %p36 = scmp.ne.s32.totalorder %s31, %s33
      %p37 = scmp.eq.s32.totalorder %s23, 0
      %p38 = por %p36, %p37
      %p39 = scmp.ne.s32.totalorder %s31, %s33
      %p40 = scmp.eq.s32.totalorder %s28, 7
      %p41 = por %p39, %p40
      %p42 = scmp.ne.s32.totalorder %s33, %s34
      %p43 = scmp.eq.s32.totalorder %s28, 0
      %p44 = por %p42, %p43
      %p45 = scmp.ne.s32.totalorder %s33, %s34
      %p46 = scmp.eq.s32.totalorder %s29, 7
      %p47 = por %p45, %p46
      %p49 = scmp.ne.s32.totalorder %s34, %s48
      %p50 = scmp.eq.s32.totalorder %s29, 0
      %p51 = por %p49, %p50
      %s53 = sadd.s32 %s52, 1
      %p56 = scmp.eq.s32.totalorder %s23, 7
      %p57 = scmp.ne.s32.totalorder %s52, %s54
      %p58 = scmp.eq.s32.totalorder %s23, 0
      %p59 = por %p57, %p58
      %p60 = scmp.ne.s32.totalorder %s52, %s54
      %p61 = scmp.eq.s32.totalorder %s28, 7
      %p62 = por %p60, %p61
      %p63 = scmp.ne.s32.totalorder %s54, %s55
      %p64 = scmp.eq.s32.totalorder %s28, 0
      %p65 = por %p63, %p64
      %p66 = scmp.ne.s32.totalorder %s54, %s55
      %p67 = scmp.eq.s32.totalorder %s29, 7
      %p68 = por %p66, %p67
      %p70 = scmp.ne.s32.totalorder %s55, %s69
      %p71 = scmp.eq.s32.totalorder %s29, 0
      %p72 = por %p70, %p71
      %s74 = sadd.s32 %s73, 1
      %p77 = scmp.eq.s32.totalorder %s23, 7
      %p78 = scmp.ne.s32.totalorder %s73, %s75
      %p79 = scmp.eq.s32.totalorder %s23, 0
      %p80 = por %p78, %p79
      %p81 = scmp.ne.s32.totalorder %s73, %s75
      %p82 = scmp.eq.s32.totalorder %s28, 7
      %p83 = por %p81, %p82
      %p84 = scmp.ne.s32.totalorder %s75, %s76
      %p85 = scmp.eq.s32.totalorder %s28, 0
      %p86 = por %p84, %p85
      %p87 = scmp.ne.s32.totalorder %s75, %s76
      %p88 = scmp.eq.s32.totalorder %s29, 7
      %p89 = por %p87, %p88
      %p91 = scmp.ne.s32.totalorder %s76, %s90
      %p92 = scmp.eq.s32.totalorder %s29, 0
      %p93 = por %p91, %p92
      %s95 = sadd.s32 %s94, 1
      %p98 = scmp.eq.s32.totalorder %s23, 7
      %p99 = scmp.ne.s32.totalorder %s94, %s96
      %p100 = scmp.eq.s32.totalorder %s23, 0
      %p101 = por %p99, %p100
      %p102 = scmp.ne.s32.totalorder %s94, %s96
      %p103 = scmp.eq.s32.totalorder %s28, 7
      %p104 = por %p102, %p103
      %p105 = scmp.ne.s32.totalorder %s96, %s97
      %p106 = scmp.eq.s32.totalorder %s28, 0
      %p107 = por %p105, %p106
      %p108 = scmp.ne.s32.totalorder %s96, %s97
      %p109 = scmp.eq.s32.totalorder %s29, 7
      %p110 = por %p108, %p109
      %p112 = scmp.ne.s32.totalorder %s97, %s111
      %p113 = scmp.eq.s32.totalorder %s29, 0
      %p114 = por %p112, %p113
      %s116 = sadd.s32 %s115, 1
      %p119 = scmp.eq.s32.totalorder %s23, 7
      %p120 = scmp.ne.s32.totalorder %s115, %s117
      %p121 = scmp.eq.s32.totalorder %s23, 0
      %p122 = por %p120, %p121
      %p123 = scmp.ne.s32.totalorder %s115, %s117
      %p124 = scmp.eq.s32.totalorder %s28, 7
      %p125 = por %p123, %p124
      %p126 = scmp.ne.s32.totalorder %s117, %s118
      %p127 = scmp.eq.s32.totalorder %s28, 0
      %p128 = por %p126, %p127
      %p129 = scmp.ne.s32.totalorder %s117, %s118
      %p130 = scmp.eq.s32.totalorder %s29, 7
      %p131 = por %p129, %p130
      %p133 = scmp.ne.s32.totalorder %s118, %s132
      %p134 = scmp.eq.s32.totalorder %s29, 0
      %p135 = por %p133, %p134
      %p136 = scmp.le.s32.totalorder 1, %s23
      %p137 = scmp.lt.s32.totalorder %s23, 9
      %p138 = pnand %p136, %p137
      %p139 = pneg %p138
      // Predicated region
      $region9: #{encoder_forward.1} parent=5 // pred_check
        _
      $region10: #{encoder_forward.1} parent=5 // pred_check_branch
        %141 = sbr.rel (%p138) target = $region12
      $region11: #{encoder_forward.1} parent=5 // pred_region
        %s142 = ssub.s32 %s23, 1
        // Predicated region
        $region13: #{encoder_forward.1} parent=11 // pred_check
          %p143 = pneg %p44
        $region14: #{encoder_forward.1} parent=11 // pred_check_branch
          %145 = sbr.rel (%p143) target = $region16
        $region15: #{encoder_forward.1} parent=11 // pred_region
          %147 = vsyncadd [#allocation5], 0
          %s148 = sshll.u32 %s1, 4
          %s149 = int_to_ptr.hbm [resolvable:$true] %s148
          %s150 = sshll.u32 [#allocation4], 4
          %s151 = int_to_ptr.vmem [resolvable:$true] %s150
          %156 = dma.hbm_to_vmem [thread:$0]  %s149, 256, %s151, [#allocation5], 128, 128, 8
        $region16: #{encoder_forward.1} parent=11 // pred_fallthru
          _
        // Predicated region
        $region17: #{encoder_forward.1} parent=11 // pred_check
          %p157 = pneg %p65
        $region18: #{encoder_forward.1} parent=11 // pred_check_branch
          %159 = sbr.rel (%p157) target = $region20
        $region19: #{encoder_forward.1} parent=11 // pred_region
          %161 = vsyncadd [#allocation8], 0
          %s162 = sshll.u32 %s2, 4
          %s163 = int_to_ptr.hbm [resolvable:$true] %s162
          %s164 = sshll.u32 [#allocation7], 4
          %s165 = int_to_ptr.vmem [resolvable:$true] %s164
          %170 = dma.hbm_to_vmem [thread:$0]  %s163, 12800, %s165, [#allocation8], 512, 512, 32
        $region20: #{encoder_forward.1} parent=11 // pred_fallthru
          _
        // Predicated region
        $region21: #{encoder_forward.1} parent=11 // pred_check
          %p171 = pneg %p86
        $region22: #{encoder_forward.1} parent=11 // pred_check_branch
          %173 = sbr.rel (%p171) target = $region24
        $region23: #{encoder_forward.1} parent=11 // pred_region
          _
        $region24: #{encoder_forward.1} parent=11 // pred_fallthru
          _
      $region12: #{encoder_forward.1} parent=5 // pred_fallthru
        _
      %p174 = scmp.lt.s32.totalorder %s23, 8
      // Predicated region
      $region25: #{encoder_forward.1} parent=5 // pred_check
        %p175 = pneg %p174
      $region26: #{encoder_forward.1} parent=5 // pred_check_branch
        %177 = sbr.rel (%p175) target = $region28
      $region27: #{encoder_forward.1} parent=5 // pred_region
        _
      $region28: #{encoder_forward.1} parent=5 // pred_fallthru
        _
      %p178 = scmp.le.s32.totalorder 1, %s23
      %p179 = scmp.lt.s32.totalorder %s23, 9
      %p180 = pnand %p178, %p179
      %p181 = pneg %p180
      // Predicated region
      $region29: #{encoder_forward.1} parent=5 // pred_check
        _
      $region30: #{encoder_forward.1} parent=5 // pred_check_branch
        %183 = sbr.rel (%p180) target = $region32
      $region31: #{encoder_forward.1} parent=5 // pred_region
        %s184 = ssub.s32 %s23, 1
        // Predicated region
        $region33: #{encoder_forward.1} parent=31 // pred_check
          %p185 = pneg %p44
        $region34: #{encoder_forward.1} parent=31 // pred_check_branch
          %187 = sbr.rel (%p185) target = $region36
        $region35: #{encoder_forward.1} parent=31 // pred_region
          %189 = dma.done [#allocation5], 256
        $region36: #{encoder_forward.1} parent=31 // pred_fallthru
          _
        // Predicated region
        $region37: #{encoder_forward.1} parent=31 // pred_check
          %p190 = pneg %p65
        $region38: #{encoder_forward.1} parent=31 // pred_check_branch
          %192 = sbr.rel (%p190) target = $region40
        $region39: #{encoder_forward.1} parent=31 // pred_region
          %194 = dma.done [#allocation8], 12800
        $region40: #{encoder_forward.1} parent=31 // pred_fallthru
          _
        %p195 = pneg %p44
        %p196 = pneg %p41
        %p197 = pneg %p65
        %p198 = pneg %p62
        %p199 = pneg %p86
        %p200 = pneg %p83
        %p201 = pneg %p107
        %p202 = pneg %p104
        %p203 = pneg %p128
        %p204 = pneg %p125
        %p205 = scmp.eq.s32.totalorder %s28, 0
        // Predicated region
        $region41: #{encoder_forward.1} parent=31 // pred_check
          %p206 = pneg %p205
        $region42: #{encoder_forward.1} parent=31 // pred_check_branch
          %208 = sbr.rel (%p206) target = $region44
        $region43: #{encoder_forward.1} parent=31 // pred_region
          %v209 = vld [vmem:[%s3] sm:$0x3]
          %210 = vst [vmem:[%s5] sm:$0x3] %v209
        $region44: #{encoder_forward.1} parent=31 // pred_fallthru
          _
        %s211 = sld [smem:[#allocation3 + %s28]]
        %s212 = scalar_lea.vmem [#allocation4], %s211
        %v213 = vld [vmem:[%s212] sm:$0x1]
        %v214 = vld [vmem:[%s5] sm:$0x1]
        %v215 = vld [vmem:[%s5 + $0x1] sm:$0x1]
        %v216 = vld [vmem:[#allocation7] sm:$0xff]
        %v217 = vld [vmem:[#allocation7 + $0x8] sm:$0xff]
        %v218 = vld [vmem:[#allocation7 + $0x10] sm:$0xff]
        %v219 = vld [vmem:[#allocation7 + $0x18] sm:$0xff]
        %v220 = vld [vmem:[#allocation7 + $0x20] sm:$0xff]
        %v221 = vld [vmem:[#allocation7 + $0x28] sm:$0xff]
        %v222 = vld [vmem:[#allocation7 + $0x30] sm:$0xff]
        %v223 = vld [vmem:[#allocation7 + $0x38] sm:$0xff]
        %v224 = vld [vmem:[#allocation7 + $0x40] sm:$0xff]
        %v225 = vld [vmem:[#allocation7 + $0x48] sm:$0xff]
        %v226 = vld [vmem:[#allocation7 + $0x50] sm:$0xff]
        %v227 = vld [vmem:[#allocation7 + $0x58] sm:$0xff]
        %v228 = vld [vmem:[#allocation7 + $0x60] sm:$0xff]
        %v229 = vld [vmem:[#allocation7 + $0x68] sm:$0xff]
        %v230 = vld [vmem:[#allocation7 + $0x70] sm:$0xff]
        %v231 = vld [vmem:[#allocation7 + $0x78] sm:$0xff]
        %v232 = vld [vmem:[#allocation7 + $0x80] sm:$0xff]
        %v233 = vld [vmem:[#allocation7 + $0x88] sm:$0xff]
        %v234 = vld [vmem:[#allocation7 + $0x90] sm:$0xff]
        %v235 = vld [vmem:[#allocation7 + $0x98] sm:$0xff]
        %v236 = vld [vmem:[#allocation7 + $0xa0] sm:$0xff]
        %v237 = vld [vmem:[#allocation7 + $0xa8] sm:$0xff]
        %v238 = vld [vmem:[#allocation7 + $0xb0] sm:$0xff]
        %v239 = vld [vmem:[#allocation7 + $0xb8] sm:$0xff]
        %v240 = vld [vmem:[#allocation7 + $0xc0] sm:$0xff]
        %v241 = vld [vmem:[#allocation7 + $0xc8] sm:$0xff]
        %v242 = vld [vmem:[#allocation7 + $0xd0] sm:$0xff]
        %v243 = vld [vmem:[#allocation7 + $0xd8] sm:$0xff]
        %v244 = vld [vmem:[#allocation7 + $0xe0] sm:$0xff]
        %v245 = vld [vmem:[#allocation7 + $0xe8] sm:$0xff]
        %v246 = vld [vmem:[#allocation7 + $0xf0] sm:$0xff]
        %v247 = vld [vmem:[#allocation7 + $0xf8] sm:$0xff]
        %v248 = vld [vmem:[#allocation7 + $0x100] sm:$0xff]
        %v249 = vld [vmem:[#allocation7 + $0x108] sm:$0xff]
        %v250 = vld [vmem:[#allocation7 + $0x110] sm:$0xff]
        %v251 = vld [vmem:[#allocation7 + $0x118] sm:$0xff]
        %v252 = vld [vmem:[#allocation7 + $0x120] sm:$0xff]
        %v253 = vld [vmem:[#allocation7 + $0x128] sm:$0xff]
        %v254 = vld [vmem:[#allocation7 + $0x130] sm:$0xff]
        %v255 = vld [vmem:[#allocation7 + $0x138] sm:$0xff]
        %v256 = vld [vmem:[#allocation7 + $0x140] sm:$0xff]
        %v257 = vld [vmem:[#allocation7 + $0x148] sm:$0xff]
        %v258 = vld [vmem:[#allocation7 + $0x150] sm:$0xff]
        %v259 = vld [vmem:[#allocation7 + $0x158] sm:$0xff]
        %v260 = vld [vmem:[#allocation7 + $0x160] sm:$0xff]
        %v261 = vld [vmem:[#allocation7 + $0x168] sm:$0xff]
        %v262 = vld [vmem:[#allocation7 + $0x170] sm:$0xff]
        %v263 = vld [vmem:[#allocation7 + $0x178] sm:$0xff]
        %v264 = vld [vmem:[#allocation7 + $0x180] sm:$0xff]
        %v265 = vld [vmem:[#allocation7 + $0x188] sm:$0xff]
        %v266 = vld [vmem:[#allocation7 + $0x190] sm:$0xff]
        %v267 = vld [vmem:[#allocation7 + $0x198] sm:$0xff]
        %v268 = vld [vmem:[#allocation7 + $0x1a0] sm:$0xff]
        %v269 = vld [vmem:[#allocation7 + $0x1a8] sm:$0xff]
        %v270 = vld [vmem:[#allocation7 + $0x1b0] sm:$0xff]
        %v271 = vld [vmem:[#allocation7 + $0x1b8] sm:$0xff]
        %v272 = vld [vmem:[#allocation7 + $0x1c0] sm:$0xff]
        %v273 = vld [vmem:[#allocation7 + $0x1c8] sm:$0xff]
        %v274 = vld [vmem:[#allocation7 + $0x1d0] sm:$0xff]
        %v275 = vld [vmem:[#allocation7 + $0x1d8] sm:$0xff]
        %v276 = vld [vmem:[#allocation7 + $0x1e0] sm:$0xff]
        %v277 = vld [vmem:[#allocation7 + $0x1e8] sm:$0xff]
        %v278 = vld [vmem:[#allocation7 + $0x1f0] sm:$0xff]
        %v279 = vld [vmem:[#allocation7 + $0x1f8] sm:$0xff]
        %v280 = vld [vmem:[#allocation7 + $0x200] sm:$0xff]
        %v281 = vld [vmem:[#allocation7 + $0x208] sm:$0xff]
        %v282 = vld [vmem:[#allocation7 + $0x210] sm:$0xff]
        %v283 = vld [vmem:[#allocation7 + $0x218] sm:$0xff]
        %v284 = vld [vmem:[#allocation7 + $0x220] sm:$0xff]
        %v285 = vld [vmem:[#allocation7 + $0x228] sm:$0xff]
        %v286 = vld [vmem:[#allocation7 + $0x230] sm:$0xff]
        %v287 = vld [vmem:[#allocation7 + $0x238] sm:$0xff]
        %v288 = vld [vmem:[#allocation7 + $0x240] sm:$0xff]
        %v289 = vld [vmem:[#allocation7 + $0x248] sm:$0xff]
        %v290 = vld [vmem:[#allocation7 + $0x250] sm:$0xff]
        %v291 = vld [vmem:[#allocation7 + $0x258] sm:$0xff]
        %v292 = vld [vmem:[#allocation7 + $0x260] sm:$0xff]
        %v293 = vld [vmem:[#allocation7 + $0x268] sm:$0xff]
        %v294 = vld [vmem:[#allocation7 + $0x270] sm:$0xff]
        %v295 = vld [vmem:[#allocation7 + $0x278] sm:$0xff]
        %v296 = vld [vmem:[#allocation7 + $0x280] sm:$0xff]
        %v297 = vld [vmem:[#allocation7 + $0x288] sm:$0xff]
        %v298 = vld [vmem:[#allocation7 + $0x290] sm:$0xff]
        %v299 = vld [vmem:[#allocation7 + $0x298] sm:$0xff]
        %v300 = vld [vmem:[#allocation7 + $0x2a0] sm:$0xff]
        %v301 = vld [vmem:[#allocation7 + $0x2a8] sm:$0xff]
        %v302 = vld [vmem:[#allocation7 + $0x2b0] sm:$0xff]
        %v303 = vld [vmem:[#allocation7 + $0x2b8] sm:$0xff]
        %v304 = vld [vmem:[#allocation7 + $0x2c0] sm:$0xff]
        %v305 = vld [vmem:[#allocation7 + $0x2c8] sm:$0xff]
        %v306 = vld [vmem:[#allocation7 + $0x2d0] sm:$0xff]
        %v307 = vld [vmem:[#allocation7 + $0x2d8] sm:$0xff]
        %v308 = vld [vmem:[#allocation7 + $0x2e0] sm:$0xff]
        %v309 = vld [vmem:[#allocation7 + $0x2e8] sm:$0xff]
        %v310 = vld [vmem:[#allocation7 + $0x2f0] sm:$0xff]
        %v311 = vld [vmem:[#allocation7 + $0x2f8] sm:$0xff]
        %312 = vmatpush.msra.mxu0 %v308
        %313 = vmatpush.msra.mxu0 %v304
        %314 = vmatpush.msra.mxu0 %v300
        %315 = vmatpush.msra.mxu0 %v296
        %316 = vmatpush.msra.mxu0 %v292
        %317 = vmatpush.msra.mxu0 %v288
        %318 = vmatpush.msra.mxu0 %v284
        %319 = vmatpush.msra.mxu0 %v280
        %320 = vmatpush.msra.mxu0 %v276
        %321 = vmatpush.msra.mxu0 %v272
        %322 = vmatpush.msra.mxu0 %v268
        %323 = vmatpush.msra.mxu0 %v264
        %324 = vmatpush.msra.mxu0 %v260
        %325 = vmatpush.msra.mxu0 %v256
        %326 = vmatpush.msra.mxu0 %v252
        %327 = vmatpush.msra.mxu0 %v248
        %328 = vmatmul.f32.gmra.mxu0 %v214
        %v329 = vpop.f32.mrf.mxu0
        %v330 = vadd.f32 0.0, %v329
        %331 = vdwg.mxu0
        %332 = vmatpush.msra.mxu0 %v309
        %333 = vmatpush.msra.mxu0 %v305
        %334 = vmatpush.msra.mxu0 %v301
        %335 = vmatpush.msra.mxu0 %v297
        %336 = vmatpush.msra.mxu0 %v293
        %337 = vmatpush.msra.mxu0 %v289
        %338 = vmatpush.msra.mxu0 %v285
        %339 = vmatpush.msra.mxu0 %v281
        %340 = vmatpush.msra.mxu0 %v277
        %341 = vmatpush.msra.mxu0 %v273
        %342 = vmatpush.msra.mxu0 %v269
        %343 = vmatpush.msra.mxu0 %v265
        %344 = vmatpush.msra.mxu0 %v261
        %345 = vmatpush.msra.mxu0 %v257
        %346 = vmatpush.msra.mxu0 %v253
        %347 = vmatpush.msra.mxu0 %v249
        %348 = vmatmul.f32.gmra.mxu0 %v214
        %v349 = vpop.f32.mrf.mxu0
        %v350 = vadd.f32 0.0, %v349
        %351 = vdwg.mxu0
        %352 = vmatpush.msra.mxu0 %v310
        %353 = vmatpush.msra.mxu0 %v306
        %354 = vmatpush.msra.mxu0 %v302
        %355 = vmatpush.msra.mxu0 %v298
        %356 = vmatpush.msra.mxu0 %v294
        %357 = vmatpush.msra.mxu0 %v290
        %358 = vmatpush.msra.mxu0 %v286
        %359 = vmatpush.msra.mxu0 %v282
        %360 = vmatpush.msra.mxu0 %v278
        %361 = vmatpush.msra.mxu0 %v274
        %362 = vmatpush.msra.mxu0 %v270
        %363 = vmatpush.msra.mxu0 %v266
        %364 = vmatpush.msra.mxu0 %v262
        %365 = vmatpush.msra.mxu0 %v258
        %366 = vmatpush.msra.mxu0 %v254
        %367 = vmatpush.msra.mxu0 %v250
        %368 = vmatmul.f32.gmra.mxu0 %v214
        %v369 = vpop.f32.mrf.mxu0
        %v370 = vadd.f32 0.0, %v369
        %371 = vdwg.mxu0
        %372 = vmatpush.msra.mxu0 %v311
        %373 = vmatpush.msra.mxu0 %v307
        %374 = vmatpush.msra.mxu0 %v303
        %375 = vmatpush.msra.mxu0 %v299
        %376 = vmatpush.msra.mxu0 %v295
        %377 = vmatpush.msra.mxu0 %v291
        %378 = vmatpush.msra.mxu0 %v287
        %379 = vmatpush.msra.mxu0 %v283
        %380 = vmatpush.msra.mxu0 %v279
        %381 = vmatpush.msra.mxu0 %v275
        %382 = vmatpush.msra.mxu0 %v271
        %383 = vmatpush.msra.mxu0 %v267
        %384 = vmatpush.msra.mxu0 %v263
        %385 = vmatpush.msra.mxu0 %v259
        %386 = vmatpush.msra.mxu0 %v255
        %387 = vmatpush.msra.mxu0 %v251
        %388 = vmatmul.f32.gmra.mxu0 %v214
        %v389 = vpop.f32.mrf.mxu0
        %v390 = vadd.f32 0.0, %v389
        %391 = vdwg.mxu0
        %vm392 = vcmask 523264
        %v394 = vsel %vm392, %v213, 0
        %396 = vmatpush.msra.mxu0 0.0
        %397 = vmatpush.msra.mxu0 0.0
        %398 = vmatpush.msra.mxu0 0.0
        %399 = vmatpush.msra.mxu0 0.0
        %400 = vmatpush.msra.mxu0 0.0
        %401 = vmatpush.msra.mxu0 0.0
        %402 = vmatpush.msra.mxu0 0.0
        %403 = vmatpush.msra.mxu0 0.0
        %404 = vmatpush.msra.mxu0 %v244
        %405 = vmatpush.msra.mxu0 %v240
        %406 = vmatpush.msra.mxu0 %v236
        %407 = vmatpush.msra.mxu0 %v232
        %408 = vmatpush.msra.mxu0 %v228
        %409 = vmatpush.msra.mxu0 %v224
        %410 = vmatpush.msra.mxu0 %v220
        %411 = vmatpush.msra.mxu0 %v216
        %412 = vmatmul.f32.gmra.mxu0 %v394
        %v413 = vpop.f32.mrf.mxu0
        %v414 = vadd.f32 %v330, %v413
        %415 = vdwg.mxu0
        %416 = vmatpush.msra.mxu0 0.0
        %417 = vmatpush.msra.mxu0 0.0
        %418 = vmatpush.msra.mxu0 0.0
        %419 = vmatpush.msra.mxu0 0.0
        %420 = vmatpush.msra.mxu0 0.0
        %421 = vmatpush.msra.mxu0 0.0
        %422 = vmatpush.msra.mxu0 0.0
        %423 = vmatpush.msra.mxu0 0.0
        %424 = vmatpush.msra.mxu0 %v245
        %425 = vmatpush.msra.mxu0 %v241
        %426 = vmatpush.msra.mxu0 %v237
        %427 = vmatpush.msra.mxu0 %v233
        %428 = vmatpush.msra.mxu0 %v229
        %429 = vmatpush.msra.mxu0 %v225
        %430 = vmatpush.msra.mxu0 %v221
        %431 = vmatpush.msra.mxu0 %v217
        %432 = vmatmul.f32.gmra.mxu0 %v394
        %v433 = vpop.f32.mrf.mxu0
        %v434 = vadd.f32 %v350, %v433
        %435 = vdwg.mxu0
        %436 = vmatpush.msra.mxu0 0.0
        %437 = vmatpush.msra.mxu0 0.0
        %438 = vmatpush.msra.mxu0 0.0
        %439 = vmatpush.msra.mxu0 0.0
        %440 = vmatpush.msra.mxu0 0.0
        %441 = vmatpush.msra.mxu0 0.0
        %442 = vmatpush.msra.mxu0 0.0
        %443 = vmatpush.msra.mxu0 0.0
        %444 = vmatpush.msra.mxu0 %v246
        %445 = vmatpush.msra.mxu0 %v242
        %446 = vmatpush.msra.mxu0 %v238
        %447 = vmatpush.msra.mxu0 %v234
        %448 = vmatpush.msra.mxu0 %v230
        %449 = vmatpush.msra.mxu0 %v226
        %450 = vmatpush.msra.mxu0 %v222
        %451 = vmatpush.msra.mxu0 %v218
        %452 = vmatmul.f32.gmra.mxu0 %v394
        %v453 = vpop.f32.mrf.mxu0
        %v454 = vadd.f32 %v370, %v453
        %455 = vdwg.mxu0
        %456 = vmatpush.msra.mxu0 0.0
        %457 = vmatpush.msra.mxu0 0.0
        %458 = vmatpush.msra.mxu0 0.0
        %459 = vmatpush.msra.mxu0 0.0
        %460 = vmatpush.msra.mxu0 0.0
        %461 = vmatpush.msra.mxu0 0.0
        %462 = vmatpush.msra.mxu0 0.0
        %463 = vmatpush.msra.mxu0 0.0
        %464 = vmatpush.msra.mxu0 %v247
        %465 = vmatpush.msra.mxu0 %v243
        %466 = vmatpush.msra.mxu0 %v239
        %467 = vmatpush.msra.mxu0 %v235
        %468 = vmatpush.msra.mxu0 %v231
        %469 = vmatpush.msra.mxu0 %v227
        %470 = vmatpush.msra.mxu0 %v223
        %471 = vmatpush.msra.mxu0 %v219
        %472 = vmatmul.f32.gmra.mxu0 %v394
        %v473 = vpop.f32.mrf.mxu0
        %v474 = vadd.f32 %v390, %v473
        %475 = vdwg.mxu0
        %s476 = scalar_lea.vmem [#allocation7], 768
        %v477 = vld [vmem:[%s476] ss:$8 sm:$0xf]
        %v479 = vperm.slane %v477, 0
        %v480 = vperm.slane %v477, 1
        %v481 = vperm.slane %v477, 2
        %v482 = vperm.slane %v477, 3
        %v487 = vadd.f32 %v414, %v479
        %v488 = vadd.f32 %v434, %v480
        %v489 = vadd.f32 %v454, %v481
        %v490 = vadd.f32 %v474, %v482
        %v491 = vxor.u32 %v487, 2147483648
        %v492 = vmul.f32 %v491, 1.442695
        %v493 = vpow.pop %v492
        %v494 = vadd.f32 %v493, 1.0
        %v495 = vrcp.pop %v494
        %v496 = vmul.f32 %v494, %v495
        %v497 = vsub.f32 1.0, %v496
        %v498 = vmul.f32 %v495, %v497
        %v499 = vadd.f32 %v495, %v498
        %vm500 = vweird.f32 %v494
        %vm501 = vweird.f32 %v495
        %vm502 = vmor %vm500, %vm501
        %v503 = vsel %vm502, %v495, %v499
        %v504 = vand.u32 2147483647, %v494
        %vm505 = vcmp.eq.f32.partialorder %v504, 8.507059e+37
        %v506 = vand.u32 %v494, 2147483648
        %v507 = vor.u32 1.1754944e-38, %v506
        %v508 = vsel %vm505, %v507, %v503
        %v509 = vmul.f32 1.0, %v508
        %v510 = vxor.u32 %v488, 2147483648
        %v511 = vmul.f32 %v510, 1.442695
        %v512 = vpow.pop %v511
        %v513 = vadd.f32 %v512, 1.0
        %v514 = vrcp.pop %v513
        %v515 = vmul.f32 %v513, %v514
        %v516 = vsub.f32 1.0, %v515
        %v517 = vmul.f32 %v514, %v516
        %v518 = vadd.f32 %v514, %v517
        %vm519 = vweird.f32 %v513
        %vm520 = vweird.f32 %v514
        %vm521 = vmor %vm519, %vm520
        %v522 = vsel %vm521, %v514, %v518
        %v523 = vand.u32 2147483647, %v513
        %vm524 = vcmp.eq.f32.partialorder %v523, 8.507059e+37
        %v525 = vand.u32 %v513, 2147483648
        %v526 = vor.u32 1.1754944e-38, %v525
        %v527 = vsel %vm524, %v526, %v522
        %v528 = vmul.f32 1.0, %v527
        %v529 = vtanh.pop %v489
        %v530 = vxor.u32 %v490, 2147483648
        %v531 = vmul.f32 %v530, 1.442695
        %v532 = vpow.pop %v531
        %v533 = vadd.f32 %v532, 1.0
        %v534 = vrcp.pop %v533
        %v535 = vmul.f32 %v533, %v534
        %v536 = vsub.f32 1.0, %v535
        %v537 = vmul.f32 %v534, %v536
        %v538 = vadd.f32 %v534, %v537
        %vm539 = vweird.f32 %v533
        %vm540 = vweird.f32 %v534
        %vm541 = vmor %vm539, %vm540
        %v542 = vsel %vm541, %v534, %v538
        %v543 = vand.u32 2147483647, %v533
        %vm544 = vcmp.eq.f32.partialorder %v543, 8.507059e+37
        %v545 = vand.u32 %v533, 2147483648
        %v546 = vor.u32 1.1754944e-38, %v545
        %v547 = vsel %vm544, %v546, %v542
        %v548 = vmul.f32 1.0, %v547
        %v549 = vmul.f32 %v528, %v215
        %v550 = vmul.f32 %v509, %v529
        %v551 = vadd.f32 %v549, %v550
        %v552 = vtanh.pop %v551
        %v553 = vmul.f32 %v548, %v552
        %s554 = scalar_lea.vmem [#allocation9], %s28
        %555 = vst [vmem:[%s554] sm:$0x1] %v553
        %556 = vst [vmem:[%s5] sm:$0x1] %v553
        %557 = vst [vmem:[%s5 + $0x1] sm:$0x1] %v551
        // Predicated region
        $region45: #{encoder_forward.1} parent=31 // pred_check
          %p558 = pneg %p104
        $region46: #{encoder_forward.1} parent=31 // pred_check_branch
          %560 = sbr.rel (%p558) target = $region48
        $region47: #{encoder_forward.1} parent=31 // pred_region
          %562 = vsyncadd [#allocation6], 0
          %s564 = sshll.u32 [#allocation9], 4
          %s565 = int_to_ptr.vmem [resolvable:$true] %s564
          %s566 = sshll.u32 %s4, 4
          %s567 = int_to_ptr.hbm [resolvable:$true] %s566
          %569 = dma.vmem_to_hbm [thread:$0]  %s565, 128, %s567, [#allocation6]
        $region48: #{encoder_forward.1} parent=31 // pred_fallthru
          _
        // Predicated region
        $region49: #{encoder_forward.1} parent=31 // pred_check
          %p570 = pneg %p125
        $region50: #{encoder_forward.1} parent=31 // pred_check_branch
          %572 = sbr.rel (%p570) target = $region52
        $region51: #{encoder_forward.1} parent=31 // pred_region
          _
        $region52: #{encoder_forward.1} parent=31 // pred_fallthru
          _
        // Predicated region
        $region53: #{encoder_forward.1} parent=31 // pred_check
          %p573 = pneg %p104
        $region54: #{encoder_forward.1} parent=31 // pred_check_branch
          %575 = sbr.rel (%p573) target = $region56
        $region55: #{encoder_forward.1} parent=31 // pred_region
          %577 = dma.done [#allocation6], 128
        $region56: #{encoder_forward.1} parent=31 // pred_fallthru
          _
        // Predicated region
        $region57: #{encoder_forward.1} parent=31 // pred_check
          %p578 = pneg %p125
        $region58: #{encoder_forward.1} parent=31 // pred_check_branch
          %580 = sbr.rel (%p578) target = $region60
        $region59: #{encoder_forward.1} parent=31 // pred_region
          _
        $region60: #{encoder_forward.1} parent=31 // pred_fallthru
          _
      $region32: #{encoder_forward.1} parent=5 // pred_fallthru
        _
      %p581 = scmp.le.s32.totalorder 2, %s23
      // Predicated region
      $region61: #{encoder_forward.1} parent=5 // pred_check
        %p582 = pneg %p581
      $region62: #{encoder_forward.1} parent=5 // pred_check_branch
        %584 = sbr.rel (%p582) target = $region64
      $region63: #{encoder_forward.1} parent=5 // pred_region
        %s585 = ssub.s32 %s23, 2
      $region64: #{encoder_forward.1} parent=5 // pred_fallthru
        _
    $region6: #{encoder_forward.1} parent=1 // loop_footer
      %s27 = sadd.s32 1, %s23
    $region7: #{encoder_forward.1} parent=1 // loop_footer_branch
      %22 = sbr.rel target = $region3
    $region8: #{encoder_forward.1} parent=1 // loop_exit
      _
    %586 = vsyncpa [#allocation5], 1
    %s587 = scalar_lea.sflag [#allocation5], 1
    %588 = vsyncpa %s587, 1
    %589 = vsyncpa [#allocation8], 1
    %590 = vsyncpa [#allocation6], 1
    %s591 = scalar_lea.sflag [#allocation6], 1
    %592 = vsyncpa %s591, 1

</llo_original>
